<compile_context>
chip_gen: v7x
topology: tpu7x:2x2x1
jax: 0.10.0
libtpu: 0.0.40
codegen_flags: <defaults>
</compile_context>

<pallas_src>
import functools

import jax
import jax.numpy as jnp
from jax.experimental import pallas as pl
from jax.experimental.pallas import tpu as pltpu


def _vmem_capacity_bytes():
    """Per-core VMEM capacity, with a conservative (v7x, 64 MiB) fallback."""
    try:
        cap = int(getattr(pltpu.get_tpu_info(), "vmem_capacity_bytes", 0))
        if cap > 0:
            return cap
    except Exception:
        pass
    return 64 * 1024 * 1024


def _se_block_kernel(x_ref, w1t_ref, b1_ref, w2t_ref, b2_ref, out_ref, acc_ref,
                     *, inv_hw, tile_hw, tail_len, lane_chunks):
    # x_ref: (tile_B, C, tile_hw) block of the flattened (B, C, H*W) input.
    s = pl.program_id(1)
    n_s = pl.num_programs(1)

    @pl.when(s == 0)
    def _():
        acc_ref[...] = jnp.zeros_like(acc_ref)

    def accum_chunked(valid_len):
        # Accumulate `valid_len` lanes of this block using only vreg-aligned
        # 128-lane slices and VPU adds (no per-step cross-lane XLU reduce).
        # `valid_len` is a Python int, so this unrolls at trace time and fully
        # out-of-bounds chunks are never even loaded.
        part = None
        for i in range(lane_chunks):
            lo = i * 128
            if lo >= valid_len:
                break
            chunk = x_ref[:, :, lo:lo + 128].astype(jnp.float32)
            if lo + 128 > valid_len:  # partially-valid tail chunk: mask lanes
                lane = jax.lax.broadcasted_iota(jnp.int32, chunk.shape, 2)
                chunk = jnp.where(lane + lo < valid_len, chunk, 0.0)
            part = chunk if part is None else part + chunk
        acc_ref[...] += part

    if lane_chunks == 0:
        # Single full-extent spatial tile whose width is not a 128 multiple:
        # block is fully in bounds; one direct lane reduce, executed once.
        acc_ref[...] += jnp.sum(x_ref[...].astype(jnp.float32), axis=-1,
                                keepdims=True)
    elif tail_len == tile_hw:
        accum_chunked(tile_hw)
    else:
        @pl.when(s < n_s - 1)
        def _():
            accum_chunked(tile_hw)

        @pl.when(s == n_s - 1)
        def _():
            accum_chunked(tail_len)      # masked ragged tail, last step only

    @pl.when(s == n_s - 1)
    def _():
        # Squeeze: single cross-lane reduce of the 128-wide partials, then mean.
        pooled = jnp.sum(acc_ref[...], axis=-1) * inv_hw          # (tile_B, C)

        # Excitation: Linear(C, C*r) + Swish.  Weights are pre-transposed, so
        # the MXU consumes them directly (no in-kernel transpose).
        h = jnp.dot(pooled, w1t_ref[...],
                    preferred_element_type=jnp.float32) + b1_ref[...]
        h = h * jax.nn.sigmoid(h)

        # Linear(C*r, C) + Sigmoid.
        g = jnp.dot(h, w2t_ref[...],
                    preferred_element_type=jnp.float32) + b2_ref[...]
        out_ref[...] = jax.nn.sigmoid(g).astype(out_ref.dtype)


def se_block(x, w1, b1, w2, b2):
    """x: (B, C, H, W). w1: (C*r, C), b1: (C*r,), w2: (C, C*r), b2: (C,).

    Returns the (B, C, 1, 1) excitation gate (matching the PyTorch module,
    which returns the gate, not x * gate)."""
    B, C, H, W = x.shape
    Cr = w1.shape[0]
    assert w1.shape == (Cr, C)
    assert b1.shape == (Cr,)
    assert w2.shape == (C, Cr)
    assert b2.shape == (C,)

    hw = H * W
    hw_pad128 = pl.cdiv(hw, 128) * 128
    itemsize = jnp.dtype(x.dtype).itemsize
    w_itemsize = jnp.dtype(w1.dtype).itemsize

    # ---- generation-aware VMEM budget (v5e/v6e: 128 MiB, v7x: 64 MiB) -------
    vmem_cap = _vmem_capacity_bytes()
    vmem_budget = max(int(vmem_cap * 0.70), 8 * 1024 * 1024)   # for our buffers
    vmem_limit = min(int(vmem_cap * 0.85), 112 * 1024 * 1024)  # scoped limit

    def fixed_bytes(tb, acc_w=128):
        # Everything resident besides the double-buffered x blocks.
        return (2 * 2 * C * Cr * w_itemsize       # w1t + w2t (double-buffered)
                + 2 * (Cr + C) * w_itemsize       # biases    (double-buffered)
                + tb * C * acc_w * 4              # f32 accumulator scratch
                + 2 * tb * C * itemsize)          # output block (double-buffered)

    # ---- batch tiling --------------------------------------------------------
    # Output block's second-to-last dim must be a multiple of 8 or the full B.
    if B <= 8:
        tile_B = B
    else:
        tile_B = 8
        # Grow the batch tile only while (a) >= 2 batch blocks remain so the
        # "parallel" axis can feed both v7x TensorCores, and (b) the whole
        # spatial extent still fits one double-buffered x block.
        while (4 * tile_B <= B
               and fixed_bytes(2 * tile_B)
               + 2 * (2 * tile_B) * C * hw_pad128 * itemsize <= vmem_budget):
            tile_B *= 2
    grid_b = pl.cdiv(B, tile_B)    # ragged last batch block is masked by Pallas

    # ---- spatial tiling: largest 128-aligned tile the VMEM budget allows -----
    x_budget = max(vmem_budget - fixed_bytes(tile_B), 0)
    per_buf = x_budget // 2                                   # double-buffered x
    bytes_per_lane = max(tile_B * C * itemsize, 1)
    max_tile_hw = max(128, (per_buf // bytes_per_lane) // 128 * 128)
    # Bound trace-time unrolling of the chunked accumulate; 256 chunks already
    # gives multi-MiB x blocks for any realistic tile_B * C.
    max_tile_hw = min(max_tile_hw, 256 * 128)

    if hw_pad128 <= max_tile_hw:
        tile_hw = hw               # single full-extent tile (always legal, no mask)
    else:
        tile_hw = max_tile_hw      # 128-aligned; ragged tail masked in-kernel
    n_s = pl.cdiv(hw, tile_hw)
    tail_len = hw - (n_s - 1) * tile_hw
    lane_chunks = tile_hw // 128 if tile_hw % 128 == 0 else 0
    acc_w = 128 if lane_chunks else 1

    # Explicit VMEM estimate check (auto-sized above; fail loudly rather than
    # silently exceeding the per-core budget for pathological (B, C, r)).
    x_block_lanes = tile_hw if tile_hw % 128 == 0 else hw_pad128
    est_bytes = fixed_bytes(tile_B, acc_w) + 2 * tile_B * C * x_block_lanes * itemsize
    if est_bytes > vmem_limit:
        raise ValueError(
            f"SEBlock Pallas kernel needs ~{est_bytes / 2**20:.1f} MiB VMEM, which "
            f"exceeds the scoped limit {vmem_limit / 2**20:.1f} MiB "
            f"(B={B}, C={C}, C*r={Cr}).")

    # Flatten spatial (contiguous trailing-dim merge -> no HBM copy), transpose
    # the tiny weights once wrapper-side, pass biases as (1, N) rows.
    x_flat = x.reshape(B, C, hw)
    w1t = jnp.transpose(w1)           # (C, Cr)
    w2t = jnp.transpose(w2)           # (Cr, C)
    b1_2d = b1.reshape(1, Cr)
    b2_2d = b2.reshape(1, C)

    kernel = functools.partial(
        _se_block_kernel,
        inv_hw=1.0 / float(hw),
        tile_hw=tile_hw,
        tail_len=tail_len,
        lane_chunks=lane_chunks,
    )

    cost = pl.CostEstimate(
        flops=4 * B * C * Cr + B * C * hw,           # two matmuls + spatial adds
        transcendentals=B * Cr + B * C,              # swish + output sigmoids
        bytes_accessed=B * C * hw * itemsize
        + 2 * C * Cr * w_itemsize + (Cr + C) * w_itemsize
        + B * C * itemsize,
    )

    out = pl.pallas_call(
        kernel,
        out_shape=jax.ShapeDtypeStruct((B, C), x.dtype),
        grid_spec=pltpu.PrefetchScalarGridSpec(
            num_scalar_prefetch=0,
            grid=(grid_b, n_s),
            in_specs=[
                pl.BlockSpec((tile_B, C, tile_hw), lambda b, s: (b, 0, s)),  # x
                pl.BlockSpec((C, Cr), lambda b, s: (0, 0)),                  # w1.T
                pl.BlockSpec((1, Cr), lambda b, s: (0, 0)),                  # b1
                pl.BlockSpec((Cr, C), lambda b, s: (0, 0)),                  # w2.T
                pl.BlockSpec((1, C), lambda b, s: (0, 0)),                   # b2
            ],
            out_specs=pl.BlockSpec((tile_B, C), lambda b, s: (b, 0)),
            scratch_shapes=[pltpu.VMEM((tile_B, C, acc_w), jnp.float32)],
        ),
        compiler_params=pltpu.CompilerParams(
            dimension_semantics=("parallel", "arbitrary"),
            vmem_limit_bytes=int(vmem_limit),
        ),
        cost_estimate=cost,
    )(x_flat, w1t, b1_2d, w2t, b2_2d)

    # Glue reshape to match PyTorch's .view(B, C, 1, 1)
    return out.reshape(B, C, 1, 1)


if __name__ == "__main__":
    # Small shapes consistent with the module: batch=2, channels=4, spatial=16, r=4
    B, C, H, W = 2, 4, 16, 16
    r = 4
    Cr = C * r

    key = jax.random.PRNGKey(0)
    kx, kw1, kb1, kw2, kb2 = jax.random.split(key, 5)

    x = jax.random.normal(kx, (B, C, H, W), dtype=jnp.float32)
    # Deterministic synthetic parameters (PyTorch Linear layout: weight (out, in))
    w1 = jax.random.normal(kw1, (Cr, C), dtype=jnp.float32) * 0.1
    b1 = jax.random.normal(kb1, (Cr,), dtype=jnp.float32) * 0.1
    w2 = jax.random.normal(kw2, (C, Cr), dtype=jnp.float32) * 0.1
    b2 = jax.random.normal(kb2, (C,), dtype=jnp.float32) * 0.1

    out = se_block(x, w1, b1, w2, b2)
    out = jax.block_until_ready(out)

    # Lightweight sanity check against a pure-JAX reference.
    pooled = jnp.mean(x, axis=(2, 3))
    h = pooled @ w1.T + b1
    h = h * jax.nn.sigmoid(h)
    ref = jax.nn.sigmoid(h @ w2.T + b2).reshape(B, C, 1, 1)
    assert out.shape == (B, C, 1, 1)
    assert jnp.allclose(out, ref, atol=1e-5, rtol=1e-5)

    print("KERNEL_OK")
</pallas_src>

<mosaic_0001>
module attributes {stable_mosaic.version = 11 : i64} {
  func.func @_se_block_kernel(%arg0: i32, %arg1: i32, %arg2: memref<2x4x256xf32, #tpu.memory_space<vmem>>, %arg3: memref<4x16xf32, #tpu.memory_space<vmem>>, %arg4: memref<1x16xf32, #tpu.memory_space<vmem>>, %arg5: memref<16x4xf32, #tpu.memory_space<vmem>>, %arg6: memref<1x4xf32, #tpu.memory_space<vmem>>, %arg7: memref<2x4xf32, #tpu.memory_space<vmem>>, %arg8: memref<2x4x128xf32, #tpu.memory_space<vmem>>) attributes {dimension_semantics = [#tpu.dimension_semantics<parallel>, #tpu.dimension_semantics<arbitrary>], iteration_bounds = array<i64: 1, 1>, scalar_prefetch = 0 : i64, scratch_operands = 1 : i64, tpu.core_type = #tpu.core_type<tc>, window_params = [{transform_indices = @transform_0, window_bounds = array<i64: 2, 4, 256>}, {pipeline_mode = #tpu.pipeline_mode<synchronous>, transform_indices = @transform_1, window_bounds = array<i64: 4, 16>}, {pipeline_mode = #tpu.pipeline_mode<synchronous>, transform_indices = @transform_2, window_bounds = array<i64: 1, 16>}, {pipeline_mode = #tpu.pipeline_mode<synchronous>, transform_indices = @transform_3, window_bounds = array<i64: 16, 4>}, {pipeline_mode = #tpu.pipeline_mode<synchronous>, transform_indices = @transform_4, window_bounds = array<i64: 1, 4>}, {transform_indices = @transform_5, window_bounds = array<i64: 2, 4>}]} {
    %c0_i32 = arith.constant 0 : i32
    %0 = arith.cmpi eq, %arg1, %c0_i32 : i32
    %1 = arith.extui %0 : i1 to i32
    %c0_i32_0 = arith.constant 0 : i32
    %2 = arith.cmpi ne, %1, %c0_i32_0 : i32
    scf.if %2 {
      %cst = arith.constant 0.000000e+00 : f32
      %12 = vector.broadcast %cst : f32 to vector<2x4x128xf32>
      %c0_13 = arith.constant 0 : index
      %c0_14 = arith.constant 0 : index
      %c0_15 = arith.constant 0 : index
      %13 = vector.load %arg8[%c0_13, %c0_14, %c0_15] : memref<2x4x128xf32, #tpu.memory_space<vmem>>, vector<2x4x128xf32>
      tpu.vector_store %arg8[%c0_13, %c0_14, %c0_15], %12 {strides = array<i32>} : memref<2x4x128xf32, #tpu.memory_space<vmem>>, vector<2x4x128xf32>,
    } else {
    }
    %c0 = arith.constant 0 : index
    %c0_1 = arith.constant 0 : index
    %c0_2 = arith.constant 0 : index
    %3 = vector.load %arg2[%c0, %c0_1, %c0_2] : memref<2x4x256xf32, #tpu.memory_space<vmem>>, vector<2x4x128xf32>
    %c0_3 = arith.constant 0 : index
    %c0_4 = arith.constant 0 : index
    %c128 = arith.constant 128 : index
    %4 = vector.load %arg2[%c0_3, %c0_4, %c128] : memref<2x4x256xf32, #tpu.memory_space<vmem>>, vector<2x4x128xf32>
    %5 = arith.addf %3, %4 : vector<2x4x128xf32>
    %c0_5 = arith.constant 0 : index
    %c0_6 = arith.constant 0 : index
    %c0_7 = arith.constant 0 : index
    %6 = vector.load %arg8[%c0_5, %c0_6, %c0_7] : memref<2x4x128xf32, #tpu.memory_space<vmem>>, vector<2x4x128xf32>
    %7 = arith.addf %6, %5 : vector<2x4x128xf32>
    %c0_8 = arith.constant 0 : index
    %c0_9 = arith.constant 0 : index
    %c0_10 = arith.constant 0 : index
    %8 = vector.load %arg8[%c0_8, %c0_9, %c0_10] : memref<2x4x128xf32, #tpu.memory_space<vmem>>, vector<2x4x128xf32>
    tpu.vector_store %arg8[%c0_8, %c0_9, %c0_10], %7 {strides = array<i32>} : memref<2x4x128xf32, #tpu.memory_space<vmem>>, vector<2x4x128xf32>,
    %c0_i32_11 = arith.constant 0 : i32
    %9 = arith.cmpi eq, %arg1, %c0_i32_11 : i32
    %10 = arith.extui %9 : i1 to i32
    %c0_i32_12 = arith.constant 0 : i32
    %11 = arith.cmpi ne, %10, %c0_i32_12 : i32
    scf.if %11 {
      %c0_13 = arith.constant 0 : index
      %c0_14 = arith.constant 0 : index
      %c0_15 = arith.constant 0 : index
      %12 = vector.load %arg8[%c0_13, %c0_14, %c0_15] : memref<2x4x128xf32, #tpu.memory_space<vmem>>, vector<2x4x128xf32>
      %cst = arith.constant dense<0.000000e+00> : vector<2x4xf32>
      %13 = vector.multi_reduction <add>, %12, %cst [2] : vector<2x4x128xf32> to vector<2x4xf32>
      %cst_16 = arith.constant 3.906250e-03 : f32
      %14 = vector.broadcast %cst_16 : f32 to vector<2x4xf32>
      %15 = arith.mulf %13, %14 : vector<2x4xf32>
      %c0_17 = arith.constant 0 : index
      %c0_18 = arith.constant 0 : index
      %16 = vector.load %arg3[%c0_17, %c0_18] : memref<4x16xf32, #tpu.memory_space<vmem>>, vector<4x16xf32>
      %cst_19 = arith.constant dense<0.000000e+00> : vector<2x16xf32>
      %17 = tpu.matmul %15, %16, %cst_19 {dimension_numbers = #tpu.dot_dimension_numbers<[1], [0], [0], [1], [0, 0, 1, 1], [], []>} : vector<2x4xf32>, vector<4x16xf32>, vector<2x16xf32> -> vector<2x16xf32>
      %c0_20 = arith.constant 0 : index
      %c0_21 = arith.constant 0 : index
      %18 = vector.load %arg4[%c0_20, %c0_21] : memref<1x16xf32, #tpu.memory_space<vmem>>, vector<1x16xf32>
      %19 = vector.broadcast %18 : vector<1x16xf32> to vector<2x16xf32>
      %20 = arith.addf %17, %19 : vector<2x16xf32>
      %21 = arith.negf %20 : vector<2x16xf32>
      %22 = math.exp %21 : vector<2x16xf32>
      %cst_22 = arith.constant 1.000000e+00 : f32
      %23 = vector.broadcast %cst_22 : f32 to vector<2x16xf32>
      %24 = arith.addf %23, %22 : vector<2x16xf32>
      %25 = arith.divf %23, %24 : vector<2x16xf32>
      %26 = arith.mulf %20, %25 : vector<2x16xf32>
      %c0_23 = arith.constant 0 : index
      %c0_24 = arith.constant 0 : index
      %27 = vector.load %arg5[%c0_23, %c0_24] : memref<16x4xf32, #tpu.memory_space<vmem>>, vector<16x4xf32>
      %cst_25 = arith.constant dense<0.000000e+00> : vector<2x4xf32>
      %28 = tpu.matmul %26, %27, %cst_25 {dimension_numbers = #tpu.dot_dimension_numbers<[1], [0], [0], [1], [0, 0, 1, 1], [], []>} : vector<2x16xf32>, vector<16x4xf32>, vector<2x4xf32> -> vector<2x4xf32>
      %c0_26 = arith.constant 0 : index
      %c0_27 = arith.constant 0 : index
      %29 = vector.load %arg6[%c0_26, %c0_27] : memref<1x4xf32, #tpu.memory_space<vmem>>, vector<1x4xf32>
      %30 = vector.broadcast %29 : vector<1x4xf32> to vector<2x4xf32>
      %31 = arith.addf %28, %30 : vector<2x4xf32>
      %32 = arith.negf %31 : vector<2x4xf32>
      %33 = math.exp %32 : vector<2x4xf32>
      %cst_28 = arith.constant 1.000000e+00 : f32
      %34 = vector.broadcast %cst_28 : f32 to vector<2x4xf32>
      %35 = arith.addf %34, %33 : vector<2x4xf32>
      %36 = arith.divf %34, %35 : vector<2x4xf32>
      %c0_29 = arith.constant 0 : index
      %c0_30 = arith.constant 0 : index
      %37 = vector.load %arg7[%c0_29, %c0_30] : memref<2x4xf32, #tpu.memory_space<vmem>>, vector<2x4xf32>
      tpu.vector_store %arg7[%c0_29, %c0_30], %36 {strides = array<i32>} : memref<2x4xf32, #tpu.memory_space<vmem>>, vector<2x4xf32>,
    } else {
    }
    return
  }
  func.func @transform_0(%arg0: i32, %arg1: i32) -> (i32, i32, i32) {
    %c0_i32 = arith.constant 0 : i32
    %c0_i32_0 = arith.constant 0 : i32
    return %arg0, %c0_i32, %arg1 : i32, i32, i32
  }
  func.func @transform_1(%arg0: i32, %arg1: i32) -> (i32, i32) {
    %c0_i32 = arith.constant 0 : i32
    %c0_i32_0 = arith.constant 0 : i32
    %c0_i32_1 = arith.constant 0 : i32
    return %c0_i32, %c0_i32_0 : i32, i32
  }
  func.func @transform_2(%arg0: i32, %arg1: i32) -> (i32, i32) {
    %c0_i32 = arith.constant 0 : i32
    %c0_i32_0 = arith.constant 0 : i32
    %c0_i32_1 = arith.constant 0 : i32
    return %c0_i32, %c0_i32_0 : i32, i32
  }
  func.func @transform_3(%arg0: i32, %arg1: i32) -> (i32, i32) {
    %c0_i32 = arith.constant 0 : i32
    %c0_i32_0 = arith.constant 0 : i32
    %c0_i32_1 = arith.constant 0 : i32
    return %c0_i32, %c0_i32_0 : i32, i32
  }
  func.func @transform_4(%arg0: i32, %arg1: i32) -> (i32, i32) {
    %c0_i32 = arith.constant 0 : i32
    %c0_i32_0 = arith.constant 0 : i32
    %c0_i32_1 = arith.constant 0 : i32
    return %c0_i32, %c0_i32_0 : i32, i32
  }
  func.func @transform_5(%arg0: i32, %arg1: i32) -> (i32, i32) {
    %c0_i32 = arith.constant 0 : i32
    %c0_i32_0 = arith.constant 0 : i32
    return %arg0, %c0_i32 : i32, i32
  }
}

</mosaic_0001>

<llo_original>
// kernel: tpu_custom_call.1
$region0: #{tpu_custom_call.1}
  #allocation0 [shape = 'u32[]', space=smem, size = 0x4, offset = 0x4, fixed_abs, tag = 'smem constant byte address 0x4 - core index']
  #allocation1 [shape = 'u32[144,128]{1,0:T(1,128)}', space=vmem, size = 0x12000, scoped, tag = 'internal scratch']
  #allocation2 [shape = 'f32[2,4,128]{2,1,0:T(4,128)}', space=vmem, size = 0x1000, scoped, tag = 'scratch operand']
  %s0 = inlined_call_operand.vmem [shape: f32[2,4,256], index: 0, kind: input, shape index: {}]
  %s1 = inlined_call_operand.vmem [shape: f32[4,16], index: 1, kind: input, shape index: {}]
  %s2 = inlined_call_operand.vmem [shape: f32[1,16], index: 2, kind: input, shape index: {}]
  %s3 = inlined_call_operand.vmem [shape: f32[16,4], index: 3, kind: input, shape index: {}]
  %s4 = inlined_call_operand.vmem [shape: f32[1,4], index: 4, kind: input, shape index: {}]
  %s5 = inlined_call_operand.hbm [shape: f32[2,4], index: 5, kind: output, shape index: {}]
  %s6 = sld [smem:[#allocation0]]
  $region38: #{tpu_custom_call.1} parent=0
    _
  %s8 = ssub.s32 1, %s6
  %s9 = scalar_select 0, %s8, %s6
  $region1: #{tpu_custom_call.1} parent=0
    #allocation3 [shape = 'u8[1024]{0}', space=vmem, size = 0x400, scoped, tag = 'output window, operand 0, single buffered']
    #allocation4 [shape = 's32[1]{0}', space=sflag, size = 0x4, scoped, tag = 'scoped memory for tpu_custom_call.1']
    %10 = vsyncpa [#allocation4], 0
    // Predicated region
    $region2: #{tpu_custom_call.1} parent=1 // pred_check
      _
    $region3: #{tpu_custom_call.1} parent=1 // pred_check_branch
      %12 = sbr.rel (0) target = $region5
    $region4: #{tpu_custom_call.1} parent=1 // pred_region
      _
    $region5: #{tpu_custom_call.1} parent=1 // pred_fallthru
      _
    // Predicated region
    $region6: #{tpu_custom_call.1} parent=1 // pred_check
      _
    $region7: #{tpu_custom_call.1} parent=1 // pred_check_branch
      %14 = sbr.rel (0) target = $region9
    $region8: #{tpu_custom_call.1} parent=1 // pred_region
      _
    $region9: #{tpu_custom_call.1} parent=1 // pred_fallthru
      _
    // Predicated region
    $region10: #{tpu_custom_call.1} parent=1 // pred_check
      _
    $region11: #{tpu_custom_call.1} parent=1 // pred_check_branch
      %16 = sbr.rel (0) target = $region13
    $region12: #{tpu_custom_call.1} parent=1 // pred_region
      _
    $region13: #{tpu_custom_call.1} parent=1 // pred_fallthru
      _
    // Predicated region
    $region14: #{tpu_custom_call.1} parent=1 // pred_check
      _
    $region15: #{tpu_custom_call.1} parent=1 // pred_check_branch
      %18 = sbr.rel (0) target = $region17
    $region16: #{tpu_custom_call.1} parent=1 // pred_region
      _
    $region17: #{tpu_custom_call.1} parent=1 // pred_fallthru
      _
    // Predicated region
    $region18: #{tpu_custom_call.1} parent=1 // pred_check
      _
    $region19: #{tpu_custom_call.1} parent=1 // pred_check_branch
      %20 = sbr.rel (0) target = $region21
    $region20: #{tpu_custom_call.1} parent=1 // pred_region
      _
    $region21: #{tpu_custom_call.1} parent=1 // pred_fallthru
      _
    %p21 = scmp.eq.s32.totalorder 0, 0
    // Predicated region
    $region22: #{tpu_custom_call.1} parent=1 // pred_check
      %p22 = pneg %p21
    $region23: #{tpu_custom_call.1} parent=1 // pred_check_branch
      %24 = sbr.rel (%p22) target = $region25
    $region24: #{tpu_custom_call.1} parent=1 // pred_region
      %25 = vst [vmem:[#allocation2] sm:$0xf] 0.0
      %26 = vst [vmem:[#allocation2 + $0x4] sm:$0xf] 0.0
    $region25: #{tpu_custom_call.1} parent=1 // pred_fallthru
      _
    %v27 = vld [vmem:[%s0] sm:$0xf]
    %v28 = vld [vmem:[%s0 + $0x8] sm:$0xf]
    %v29 = vld [vmem:[%s0 + $0x4] sm:$0xf]
    %v30 = vld [vmem:[%s0 + $0xc] sm:$0xf]
    %v31 = vadd.f32 %v27, %v29
    %v32 = vadd.f32 %v28, %v30
    %v33 = vld [vmem:[#allocation2] sm:$0xf]
    %v34 = vld [vmem:[#allocation2 + $0x4] sm:$0xf]
    %v35 = vadd.f32 %v33, %v31
    %v36 = vadd.f32 %v34, %v32
    %37 = vst [vmem:[#allocation2] sm:$0xf] %v35
    %38 = vst [vmem:[#allocation2 + $0x4] sm:$0xf] %v36
    // Predicated region
    $region26: #{tpu_custom_call.1} parent=1 // pred_check
      %p39 = pneg %p21
    $region27: #{tpu_custom_call.1} parent=1 // pred_check_branch
      %41 = sbr.rel (%p39) target = $region29
    $region28: #{tpu_custom_call.1} parent=1 // pred_region
      %v42 = vld [vmem:[#allocation2] sm:$0xf]
      %v43 = vld [vmem:[#allocation2 + $0x4] sm:$0xf]
      %vm44 = vcmask 1043456
      %v45 = vsel %vm44, %v42, 0.0
      %46 = vadd.xlane.f32.xlu0 %v45
      %v47 = vpop.xlane.xlu0 %46
      %v48 = vsel %vm44, %v43, 0.0
      %49 = vadd.xlane.f32.xlu0 %v48
      %v50 = vpop.xlane.xlu0 %49
      %v51 = vmul.f32 %v47, 0.00390625
      %v52 = vmul.f32 %v50, 0.00390625
      %v53 = vld [vmem:[%s1] sm:$0xf]
      %v54 = vld [vmem:[%s2] sm:$0x1]
      %v56 = vlaneseq
      %v57 = vshrl.u32 %v56, 7
      %v58 = vsub.s32 0, %v57
      %v59 = vrot.slane %v54, %v58
      %v63 = vlaneseq
      %v64 = vand.u32 %v63, 127
      %v65 = vlaneseq
      %v66 = vshrl.u32 %v65, 7
      %v67 = vsub.s32 %v64, %v66
      %v68 = vrot.slane %v51, %v67
      %v69 = vlaneseq
      %v70 = vshrl.u32 %v69, 7
      %v71 = vsub.s32 %v64, %v70
      %v72 = vrot.slane %v52, %v71
      %vm73 = vcmask 1041409
      %v74 = vsel %vm73, %v72, %v68
      %vm75 = vcmask 31744
      %v76 = vsel %vm75, %v74, 0
      %v79 = vsel %vm44, %v53, 0
      %81 = vmatprep.subr.mxu0 0.0
      %82 = vmatpush1.msra.mxu0 %v79
      %83 = vmatprep.subr.mxu0 0.0
      %84 = vmatpush1.msra.mxu0 0.0
      %85 = vmatprep.subr.mxu0 0.0
      %86 = vmatpush1.msra.mxu0 0.0
      %87 = vmatprep.subr.mxu0 0.0
      %88 = vmatpush1.msra.mxu0 0.0
      %89 = vmatprep.subr.mxu0 0.0
      %90 = vmatpush1.msra.mxu0 0.0
      %91 = vmatprep.subr.mxu0 0.0
      %92 = vmatpush1.msra.mxu0 0.0
      %93 = vmatprep.subr.mxu0 0.0
      %94 = vmatpush1.msra.mxu0 0.0
      %95 = vmatprep.subr.mxu0 0.0
      %96 = vmatpush1.msra.mxu0 0.0
      %97 = vmatprep.subr.mxu0 0.0
      %98 = vmatpush1.msra.mxu0 0.0
      %99 = vmatprep.subr.mxu0 0.0
      %100 = vmatpush1.msra.mxu0 0.0
      %101 = vmatprep.subr.mxu0 0.0
      %102 = vmatpush1.msra.mxu0 0.0
      %103 = vmatprep.subr.mxu0 0.0
      %104 = vmatpush1.msra.mxu0 0.0
      %105 = vmatprep.subr.mxu0 0.0
      %106 = vmatpush1.msra.mxu0 0.0
      %107 = vmatprep.subr.mxu0 0.0
      %108 = vmatpush1.msra.mxu0 0.0
      %109 = vmatprep.subr.mxu0 0.0
      %110 = vmatpush1.msra.mxu0 0.0
      %111 = vmatprep.subr.mxu0 0.0
      %112 = vmatpush1.msra.mxu0 0.0
      %113 = vmatprep.subr.mxu0 0.0
      %114 = vmatpush1.msra.mxu0 0.0
      %115 = vmatprep.subr.mxu0 0.0
      %116 = vmatpush1.msra.mxu0 0.0
      %117 = vmatprep.subr.mxu0 0.0
      %118 = vmatpush1.msra.mxu0 0.0
      %119 = vmatprep.subr.mxu0 0.0
      %120 = vmatpush1.msra.mxu0 0.0
      %121 = vmatprep.subr.mxu0 0.0
      %122 = vmatpush1.msra.mxu0 0.0
      %123 = vmatprep.subr.mxu0 0.0
      %124 = vmatpush1.msra.mxu0 0.0
      %125 = vmatprep.subr.mxu0 0.0
      %126 = vmatpush1.msra.mxu0 0.0
      %127 = vmatprep.subr.mxu0 0.0
      %128 = vmatpush1.msra.mxu0 0.0
      %129 = vmatprep.subr.mxu0 0.0
      %130 = vmatpush1.msra.mxu0 0.0
      %131 = vmatprep.subr.mxu0 0.0
      %132 = vmatpush1.msra.mxu0 0.0
      %133 = vmatprep.subr.mxu0 0.0
      %134 = vmatpush1.msra.mxu0 0.0
      %135 = vmatprep.subr.mxu0 0.0
      %136 = vmatpush1.msra.mxu0 0.0
      %137 = vmatprep.subr.mxu0 0.0
      %138 = vmatpush1.msra.mxu0 0.0
      %139 = vmatprep.subr.mxu0 0.0
      %140 = vmatpush1.msra.mxu0 0.0
      %141 = vmatprep.subr.mxu0 0.0
      %142 = vmatpush1.msra.mxu0 0.0
      %143 = vmatprep.subr.mxu0 0.0
      %144 = vmatpush1.msra.mxu0 0.0
      %145 = vmatprep.mubr.f32.mxu0 0.0
      %146 = vmatmul.mubr.f32.gmra.mrb[0].mxu0 %v76
      %v147 = vpop.f32.mrb[0].mxu0
      %v148 = vadd.f32 %v59, %v147
      %v149 = vpop.f32.mrb[0].mxu0
      %150 = vdwg.mxu0
      %v151 = vxor.u32 %v148, 2147483648
      %v152 = vmul.f32 %v151, 1.442695
      %v153 = vpow.pop %v152
      %v154 = vadd.f32 %v153, 1.0
      %v155 = vrcp.pop %v154
      %v156 = vmul.f32 1.0, %v155
      %v157 = vmul.f32 %v148, %v156
      %v158 = vld [vmem:[%s3] sm:$0xff]
      %v159 = vld [vmem:[%s3 + $0x8] sm:$0xff]
      %v160 = vld [vmem:[%s4] sm:$0x1]
      %v162 = vlaneseq
      %v163 = vshrl.u32 %v162, 7
      %v164 = vsub.s32 0, %v163
      %v165 = vrot.slane %v160, %v164
      %vm167 = vcmask 130048
      %v169 = vsel %vm167, %v157, 0
      %171 = vmatprep.subr.mxu0 0.0
      %172 = vmatpush1.msra.mxu0 %v158
      %173 = vmatprep.subr.mxu0 0.0
      %174 = vmatpush1.msra.mxu0 %v159
      %175 = vmatprep.subr.mxu0 0.0
      %176 = vmatpush1.msra.mxu0 0.0
      %177 = vmatprep.subr.mxu0 0.0
      %178 = vmatpush1.msra.mxu0 0.0
      %179 = vmatprep.subr.mxu0 0.0
      %180 = vmatpush1.msra.mxu0 0.0
      %181 = vmatprep.subr.mxu0 0.0
      %182 = vmatpush1.msra.mxu0 0.0
      %183 = vmatprep.subr.mxu0 0.0
      %184 = vmatpush1.msra.mxu0 0.0
      %185 = vmatprep.subr.mxu0 0.0
      %186 = vmatpush1.msra.mxu0 0.0
      %187 = vmatprep.subr.mxu0 0.0
      %188 = vmatpush1.msra.mxu0 0.0
      %189 = vmatprep.subr.mxu0 0.0
      %190 = vmatpush1.msra.mxu0 0.0
      %191 = vmatprep.subr.mxu0 0.0
      %192 = vmatpush1.msra.mxu0 0.0
      %193 = vmatprep.subr.mxu0 0.0
      %194 = vmatpush1.msra.mxu0 0.0
      %195 = vmatprep.subr.mxu0 0.0
      %196 = vmatpush1.msra.mxu0 0.0
      %197 = vmatprep.subr.mxu0 0.0
      %198 = vmatpush1.msra.mxu0 0.0
      %199 = vmatprep.subr.mxu0 0.0
      %200 = vmatpush1.msra.mxu0 0.0
      %201 = vmatprep.subr.mxu0 0.0
      %202 = vmatpush1.msra.mxu0 0.0
      %203 = vmatprep.subr.mxu0 0.0
      %204 = vmatpush1.msra.mxu0 0.0
      %205 = vmatprep.subr.mxu0 0.0
      %206 = vmatpush1.msra.mxu0 0.0
      %207 = vmatprep.subr.mxu0 0.0
      %208 = vmatpush1.msra.mxu0 0.0
      %209 = vmatprep.subr.mxu0 0.0
      %210 = vmatpush1.msra.mxu0 0.0
      %211 = vmatprep.subr.mxu0 0.0
      %212 = vmatpush1.msra.mxu0 0.0
      %213 = vmatprep.subr.mxu0 0.0
      %214 = vmatpush1.msra.mxu0 0.0
      %215 = vmatprep.subr.mxu0 0.0
      %216 = vmatpush1.msra.mxu0 0.0
      %217 = vmatprep.subr.mxu0 0.0
      %218 = vmatpush1.msra.mxu0 0.0
      %219 = vmatprep.subr.mxu0 0.0
      %220 = vmatpush1.msra.mxu0 0.0
      %221 = vmatprep.subr.mxu0 0.0
      %222 = vmatpush1.msra.mxu0 0.0
      %223 = vmatprep.subr.mxu0 0.0
      %224 = vmatpush1.msra.mxu0 0.0
      %225 = vmatprep.subr.mxu0 0.0
      %226 = vmatpush1.msra.mxu0 0.0
      %227 = vmatprep.subr.mxu0 0.0
      %228 = vmatpush1.msra.mxu0 0.0
      %229 = vmatprep.subr.mxu0 0.0
      %230 = vmatpush1.msra.mxu0 0.0
      %231 = vmatprep.subr.mxu0 0.0
      %232 = vmatpush1.msra.mxu0 0.0
      %233 = vmatprep.subr.mxu0 0.0
      %234 = vmatpush1.msra.mxu0 0.0
      %235 = vmatprep.mubr.f32.mxu0 0.0
      %236 = vmatmul.mubr.f32.gmra.mrb[0].mxu0 %v169
      %v237 = vpop.f32.mrb[0].mxu0
      %v238 = vadd.f32 %v165, %v237
      %v239 = vpop.f32.mrb[0].mxu0
      %240 = vdwg.mxu0
      %v241 = vxor.u32 %v238, 2147483648
      %v242 = vmul.f32 %v241, 1.442695
      %v243 = vpow.pop %v242
      %v244 = vadd.f32 %v243, 1.0
      %v245 = vrcp.pop %v244
      %v246 = vmul.f32 1.0, %v245
      %vm247 = vcmask 25600
      %248 = vst.msk [vmem:[#allocation3] sm:$0x3] %vm247, %v246
    $region29: #{tpu_custom_call.1} parent=1 // pred_fallthru
      _
    // Predicated region
    $region30: #{tpu_custom_call.1} parent=1 // pred_check
      _
    $region31: #{tpu_custom_call.1} parent=1 // pred_check_branch
      %250 = sbr.rel (0) target = $region33
    $region32: #{tpu_custom_call.1} parent=1 // pred_region
      %s252 = ssub.s32 32, 32
      %253 = vsyncadd [#allocation4], %s252
      %s255 = sshll.u32 [#allocation3], 4
      %s256 = int_to_ptr.vmem [resolvable:$true] %s255
      %258 = dma.vmem_to_hbm [thread:$0]  %s256, 32, %s5, [#allocation4]
    $region33: #{tpu_custom_call.1} parent=1 // pred_fallthru
      _
    // Predicated region
    $region34: #{tpu_custom_call.1} parent=1 // pred_check
      _
    $region35: #{tpu_custom_call.1} parent=1 // pred_check_branch
      %260 = sbr.rel (0) target = $region37
    $region36: #{tpu_custom_call.1} parent=1 // pred_region
      %261 = dma.done [#allocation4], 32
    $region37: #{tpu_custom_call.1} parent=1 // pred_fallthru
      _
    %262 = vsyncpa [#allocation4], 1

</llo_original>
